<compile_context>
chip_gen: v7x
topology: tpu7x:2x2x1
jax: 0.10.0
libtpu: 0.0.40
codegen_flags: <defaults>
</compile_context>

<pallas_src>
import functools
import jax
import jax.numpy as jnp
from jax.experimental import pallas as pl
from jax.experimental.pallas import tpu as pltpu


# ----------------------------------------------------------------------------- #
# Tiling helpers
# ----------------------------------------------------------------------------- #
def _pick_tile(full, target, align):
    """Largest tile <= target that either equals `full` or is an align-multiple divisor."""
    if full <= target:
        return full
    t = (target // align) * align
    for cand in range(t, 0, -align):
        if full % cand == 0:
            return cand
    return full


_VMEM_LIMIT = 48 * 1024 * 1024  # conservative: fits v7x's 64 MiB per-core VMEM


# ----------------------------------------------------------------------------- #
# Fused (LayerNorm) + Linear (+ bias) (+ GELU) (+ residual) kernel
# (used for patch embedding and the mlp_head)
# ----------------------------------------------------------------------------- #
def _fused_linear_kernel(*refs, act, has_bias, has_norm, has_res):
    it = iter(refs)
    x_ref = next(it)
    w_ref = next(it)
    b_ref = next(it) if has_bias else None
    g_ref = next(it) if has_norm else None
    bt_ref = next(it) if has_norm else None
    r_ref = next(it) if has_res else None
    o_ref = next(it)

    x = x_ref[...].astype(jnp.float32)
    if has_norm:
        # torch.nn.LayerNorm (eps=1e-5), stats in f32 (v5e has no bf16 VPU/EUP).
        mu = jnp.mean(x, axis=-1, keepdims=True)
        var = jnp.mean(jnp.square(x - mu), axis=-1, keepdims=True)
        x = (x - mu) * jax.lax.rsqrt(var + 1e-5)
        x = x * g_ref[...].astype(jnp.float32) + bt_ref[...].astype(jnp.float32)

    # bf16 MXU operands, f32 accumulation.
    y = jnp.dot(x.astype(jnp.bfloat16), w_ref[...].astype(jnp.bfloat16),
                preferred_element_type=jnp.float32)
    if has_bias:
        y = y + b_ref[...].astype(jnp.float32)
    if act == "gelu":
        # nn.GELU() default = exact (erf) gelu, in f32.
        y = jax.nn.gelu(y, approximate=False)
    if has_res:
        y = y + r_ref[...].astype(jnp.float32)
    o_ref[...] = y.astype(o_ref.dtype)


def fused_linear(x, w, b=None, *, gamma=None, beta=None, residual=None, act=None,
                 tm_target=512, tn_target=512):
    """x: (M, K); w: (K, N); b/gamma/beta: (1, *); residual: (M, N) -> (M, N)."""
    M, K = x.shape
    N = w.shape[1]
    tm = _pick_tile(M, tm_target, 8)
    tn = _pick_tile(N, tn_target, 128)
    grid = (M // tm, N // tn)

    in_specs = [
        pl.BlockSpec((tm, K), lambda i, j: (i, 0)),
        pl.BlockSpec((K, tn), lambda i, j: (0, j)),
    ]
    args = [x, w]
    if b is not None:
        in_specs.append(pl.BlockSpec((1, tn), lambda i, j: (0, j)))
        args.append(b)
    if gamma is not None:
        in_specs.append(pl.BlockSpec((1, K), lambda i, j: (0, 0)))
        args.append(gamma)
        in_specs.append(pl.BlockSpec((1, K), lambda i, j: (0, 0)))
        args.append(beta)
    if residual is not None:
        in_specs.append(pl.BlockSpec((tm, tn), lambda i, j: (i, j)))
        args.append(residual)

    kernel = functools.partial(
        _fused_linear_kernel, act=act,
        has_bias=b is not None, has_norm=gamma is not None,
        has_res=residual is not None)

    flops = 2 * M * K * N
    transcendentals = M * N if act == "gelu" else 0
    bytes_accessed = 4 * M * K + 2 * K * N + 4 * M * N
    if residual is not None:
        bytes_accessed += 4 * M * N

    return pl.pallas_call(
        kernel,
        out_shape=jax.ShapeDtypeStruct((M, N), x.dtype),
        grid=grid,
        in_specs=in_specs,
        out_specs=pl.BlockSpec((tm, tn), lambda i, j: (i, j)),
        compiler_params=pltpu.CompilerParams(
            dimension_semantics=("parallel", "parallel"),
            vmem_limit_bytes=_VMEM_LIMIT),
        cost_estimate=pl.CostEstimate(
            flops=flops, transcendentals=transcendentals,
            bytes_accessed=bytes_accessed),
    )(*args)


# ----------------------------------------------------------------------------- #
# Standalone LayerNorm (only used if a transformer has depth == 0)
# ----------------------------------------------------------------------------- #
def _layernorm_kernel(x_ref, g_ref, b_ref, o_ref):
    x = x_ref[...].astype(jnp.float32)
    mu = jnp.mean(x, axis=-1, keepdims=True)
    var = jnp.mean(jnp.square(x - mu), axis=-1, keepdims=True)
    y = (x - mu) * jax.lax.rsqrt(var + 1e-5)
    o_ref[...] = (y * g_ref[...].astype(jnp.float32)
                  + b_ref[...].astype(jnp.float32)).astype(o_ref.dtype)


def layernorm(x, g, b, tm_target=1024):
    M, D = x.shape
    tm = _pick_tile(M, tm_target, 8)
    return pl.pallas_call(
        _layernorm_kernel,
        out_shape=jax.ShapeDtypeStruct((M, D), x.dtype),
        grid=(M // tm,),
        in_specs=[
            pl.BlockSpec((tm, D), lambda i: (i, 0)),
            pl.BlockSpec((1, D), lambda i: (0, 0)),
            pl.BlockSpec((1, D), lambda i: (0, 0)),
        ],
        out_specs=pl.BlockSpec((tm, D), lambda i: (i, 0)),
        compiler_params=pltpu.CompilerParams(
            dimension_semantics=("parallel",),
            vmem_limit_bytes=_VMEM_LIMIT),
    )(x, g, b)


# ----------------------------------------------------------------------------- #
# Fused attention sub-block: x + to_out(Attention(LN(x))), one grid step / batch
# ----------------------------------------------------------------------------- #
def _attn_block_kernel(x_ref, g_ref, b_ref, wqkv_ref, wo_ref, bo_ref, o_ref,
                       *, heads, dim_head, scale):
    inner = heads * dim_head
    x = x_ref[0].astype(jnp.float32)                              # (N, D)

    # PreNorm (LayerNorm, eps=1e-5)
    mu = jnp.mean(x, axis=-1, keepdims=True)
    var = jnp.mean(jnp.square(x - mu), axis=-1, keepdims=True)
    xn = (x - mu) * jax.lax.rsqrt(var + 1e-5)
    xn = xn * g_ref[...].astype(jnp.float32) + b_ref[...].astype(jnp.float32)

    # to_qkv (bias=False), bf16 MXU with f32 accumulation
    qkv = jnp.dot(xn.astype(jnp.bfloat16), wqkv_ref[...].astype(jnp.bfloat16),
                  preferred_element_type=jnp.float32)             # (N, 3*inner)

    outs = []
    for h in range(heads):                                        # static unroll
        q = qkv[:, h * dim_head:(h + 1) * dim_head] * scale       # fold scale into q
        k = qkv[:, inner + h * dim_head: inner + (h + 1) * dim_head]
        v = qkv[:, 2 * inner + h * dim_head: 2 * inner + (h + 1) * dim_head]
        # q @ k^T via dot_general (no explicit transpose)
        s = jax.lax.dot_general(
            q.astype(jnp.bfloat16), k.astype(jnp.bfloat16),
            (((1,), (1,)), ((), ())), preferred_element_type=jnp.float32)
        s = s - jnp.max(s, axis=-1, keepdims=True)
        p = jnp.exp(s)
        inv = pl.reciprocal(jnp.sum(p, axis=-1, keepdims=True), approx=True)
        p = p * inv
        o = jnp.dot(p.astype(jnp.bfloat16), v.astype(jnp.bfloat16),
                    preferred_element_type=jnp.float32)
        outs.append(o)
    attn = jnp.concatenate(outs, axis=-1)                         # (N, inner), lane-dense

    # to_out Linear + bias, fused residual
    y = jnp.dot(attn.astype(jnp.bfloat16), wo_ref[...].astype(jnp.bfloat16),
                preferred_element_type=jnp.float32)
    y = y + bo_ref[...].astype(jnp.float32) + x
    o_ref[0] = y.astype(o_ref.dtype)


def attention_block(x, p, heads, dim_head):
    """x + PreNorm(Attention)(x) as a single pallas_call, grid over batch."""
    B, N, D = x.shape
    inner = heads * dim_head
    scale = dim_head ** -0.5
    kernel = functools.partial(_attn_block_kernel, heads=heads,
                               dim_head=dim_head, scale=scale)
    flops = B * (2 * N * D * 3 * inner          # qkv projection
                 + 4 * heads * N * N * dim_head  # attention
                 + 2 * N * inner * D)            # out projection
    bytes_accessed = 8 * B * N * D + 2 * (D * 3 * inner + inner * D)
    return pl.pallas_call(
        kernel,
        out_shape=jax.ShapeDtypeStruct((B, N, D), x.dtype),
        grid=(B,),
        in_specs=[
            pl.BlockSpec((1, N, D), lambda b: (b, 0, 0)),
            pl.BlockSpec((1, D), lambda b: (0, 0)),
            pl.BlockSpec((1, D), lambda b: (0, 0)),
            pl.BlockSpec((D, 3 * inner), lambda b: (0, 0)),
            pl.BlockSpec((inner, D), lambda b: (0, 0)),
            pl.BlockSpec((1, D), lambda b: (0, 0)),
        ],
        out_specs=pl.BlockSpec((1, N, D), lambda b: (b, 0, 0)),
        compiler_params=pltpu.CompilerParams(
            dimension_semantics=("parallel",),
            vmem_limit_bytes=_VMEM_LIMIT),
        cost_estimate=pl.CostEstimate(
            flops=flops, transcendentals=B * heads * N * N + B * N,
            bytes_accessed=bytes_accessed),
    )(x, p["norm_g"], p["norm_b"], p["wqkv"], p["wo"], p["bo"])


# ----------------------------------------------------------------------------- #
# Fused feed-forward sub-block: x + FF(LN(x)), optional fused final LayerNorm
# ----------------------------------------------------------------------------- #
def _ff_block_kernel(*refs, has_post_norm):
    if has_post_norm:
        (x_ref, g_ref, b_ref, w1_ref, b1_ref, w2_ref, b2_ref,
         pg_ref, pb_ref, o_ref) = refs
    else:
        x_ref, g_ref, b_ref, w1_ref, b1_ref, w2_ref, b2_ref, o_ref = refs
        pg_ref = pb_ref = None

    x = x_ref[...].astype(jnp.float32)
    # PreNorm
    mu = jnp.mean(x, axis=-1, keepdims=True)
    var = jnp.mean(jnp.square(x - mu), axis=-1, keepdims=True)
    xn = (x - mu) * jax.lax.rsqrt(var + 1e-5)
    xn = xn * g_ref[...].astype(jnp.float32) + b_ref[...].astype(jnp.float32)
    # Linear -> exact GELU -> Linear, fused residual
    h = jnp.dot(xn.astype(jnp.bfloat16), w1_ref[...].astype(jnp.bfloat16),
                preferred_element_type=jnp.float32)
    h = jax.nn.gelu(h + b1_ref[...].astype(jnp.float32), approximate=False)
    y = jnp.dot(h.astype(jnp.bfloat16), w2_ref[...].astype(jnp.bfloat16),
                preferred_element_type=jnp.float32)
    y = y + b2_ref[...].astype(jnp.float32) + x
    if has_post_norm:
        # Transformer's final nn.LayerNorm fused into the last FF block
        mu2 = jnp.mean(y, axis=-1, keepdims=True)
        var2 = jnp.mean(jnp.square(y - mu2), axis=-1, keepdims=True)
        y = (y - mu2) * jax.lax.rsqrt(var2 + 1e-5)
        y = y * pg_ref[...].astype(jnp.float32) + pb_ref[...].astype(jnp.float32)
    o_ref[...] = y.astype(o_ref.dtype)


def feedforward_block(x, p, post_norm=None, tm_target=512):
    """x + PreNorm(FeedForward)(x) (+ optional final LayerNorm), one pallas_call."""
    B, N, D = x.shape
    x2 = x.reshape(B * N, D)
    M = B * N
    mlp = p["w1"].shape[1]
    tm = _pick_tile(M, tm_target, 8)
    has_post = post_norm is not None

    args = [x2, p["norm_g"], p["norm_b"], p["w1"], p["b1"], p["w2"], p["b2"]]
    in_specs = [
        pl.BlockSpec((tm, D), lambda i: (i, 0)),
        pl.BlockSpec((1, D), lambda i: (0, 0)),
        pl.BlockSpec((1, D), lambda i: (0, 0)),
        pl.BlockSpec((D, mlp), lambda i: (0, 0)),
        pl.BlockSpec((1, mlp), lambda i: (0, 0)),
        pl.BlockSpec((mlp, D), lambda i: (0, 0)),
        pl.BlockSpec((1, D), lambda i: (0, 0)),
    ]
    if has_post:
        args += [post_norm[0], post_norm[1]]
        in_specs += [pl.BlockSpec((1, D), lambda i: (0, 0)),
                     pl.BlockSpec((1, D), lambda i: (0, 0))]

    kernel = functools.partial(_ff_block_kernel, has_post_norm=has_post)
    flops = 4 * M * D * mlp
    bytes_accessed = 8 * M * D + 4 * D * mlp
    out = pl.pallas_call(
        kernel,
        out_shape=jax.ShapeDtypeStruct((M, D), x.dtype),
        grid=(M // tm,),
        in_specs=in_specs,
        out_specs=pl.BlockSpec((tm, D), lambda i: (i, 0)),
        compiler_params=pltpu.CompilerParams(
            dimension_semantics=("parallel",),
            vmem_limit_bytes=_VMEM_LIMIT),
        cost_estimate=pl.CostEstimate(
            flops=flops, transcendentals=M * mlp,
            bytes_accessed=bytes_accessed),
    )(*args)
    return out.reshape(B, N, D)


# ----------------------------------------------------------------------------- #
# Model glue (pure JAX reshapes calling the Pallas kernels)
# ----------------------------------------------------------------------------- #
def transformer(x, p, heads, dim_head):
    n_layers = len(p["layers"])
    for li, layer in enumerate(p["layers"]):
        x = attention_block(x, layer["attn"], heads, dim_head)
        post = (p["norm_g"], p["norm_b"]) if li == n_layers - 1 else None
        x = feedforward_block(x, layer["ff"], post_norm=post)
    if n_layers == 0:
        B, N, D = x.shape
        x = layernorm(x.reshape(B * N, D), p["norm_g"], p["norm_b"]).reshape(B, N, D)
    return x


def vivit_forward(x, params, cfg):
    """x: (b, t, c, H, W) float32 — same axis convention as the PyTorch module."""
    b, t, c, H, W = x.shape
    ps, dim, heads, dim_head = cfg["patch_size"], cfg["dim"], cfg["heads"], cfg["dim_head"]
    h, w = H // ps, W // ps
    n = h * w

    # Rearrange('b t c (h p1) (w p2) -> b t (h w) (p1 p2 c)')
    xp = x.reshape(b, t, c, h, ps, w, ps)
    xp = xp.transpose(0, 1, 3, 5, 4, 6, 2)                    # b t h w p1 p2 c
    xp = xp.reshape(b, t, n, ps * ps * c)

    # patch embedding (Linear)
    xe = fused_linear(xp.reshape(b * t * n, -1), params["patch_w"], params["patch_b"])
    xe = xe.reshape(b, t, n, dim)

    # prepend space cls token, add positional embedding
    cls_space = jnp.broadcast_to(params["space_token"][None], (b, t, 1, dim))
    xe = jnp.concatenate([cls_space, xe], axis=2)
    xe = xe + params["pos_embedding"][:, :, : n + 1]
    # TODO(synk): nn.Dropout(emb_dropout) — identity in eval / dropout=0.0

    # spatial transformer over (b*t) sequences
    xs = xe.reshape(b * t, n + 1, dim)
    xs = transformer(xs, params["space_tr"], heads, dim_head)

    # take spatial cls token per frame, prepend temporal cls token
    xt = xs[:, 0].reshape(b, t, dim)
    cls_temp = jnp.broadcast_to(params["temporal_token"], (b, 1, dim))
    xt = jnp.concatenate([cls_temp, xt], axis=1)
    xt = transformer(xt, params["temporal_tr"], heads, dim_head)

    # pool = 'cls'; mlp_head = LayerNorm + Linear, LN fused into the head matmul
    pooled = xt[:, 0]                                          # (b, dim)
    return fused_linear(pooled, params["head_w"], params["head_b"],
                        gamma=params["head_norm_g"], beta=params["head_norm_b"])


# ----------------------------------------------------------------------------- #
# Deterministic parameter init (shapes mirror the PyTorch module __init__)
# Matmul weights are stored in bf16 (MXU operand dtype); norm/bias params in f32.
# ----------------------------------------------------------------------------- #
def init_params(key, cfg):
    dim, depth, heads, dim_head = cfg["dim"], cfg["depth"], cfg["heads"], cfg["dim_head"]
    mlp_dim = dim * cfg["scale_dim"]
    inner = heads * dim_head
    patch_dim = cfg["in_channels"] * cfg["patch_size"] ** 2
    num_patches = (cfg["image_size"] // cfg["patch_size"]) ** 2

    keys = iter(jax.random.split(key, 256))

    def wgt(shape, scale=0.02):
        return (scale * jax.random.normal(next(keys), shape)).astype(jnp.bfloat16)

    def nrm(shape, scale=1.0):
        return (scale * jax.random.normal(next(keys), shape)).astype(jnp.float32)

    def transformer_params():
        layers = []
        for _ in range(depth):
            attn = dict(
                norm_g=jnp.ones((1, dim), jnp.float32), norm_b=jnp.zeros((1, dim), jnp.float32),
                wqkv=wgt((dim, 3 * inner)),                     # to_qkv bias=False
                wo=wgt((inner, dim)), bo=jnp.zeros((1, dim), jnp.float32),
            )
            ff = dict(
                norm_g=jnp.ones((1, dim), jnp.float32), norm_b=jnp.zeros((1, dim), jnp.float32),
                w1=wgt((dim, mlp_dim)), b1=jnp.zeros((1, mlp_dim), jnp.float32),
                w2=wgt((mlp_dim, dim)), b2=jnp.zeros((1, dim), jnp.float32),
            )
            layers.append(dict(attn=attn, ff=ff))
        return dict(layers=layers,
                    norm_g=jnp.ones((1, dim), jnp.float32),
                    norm_b=jnp.zeros((1, dim), jnp.float32))

    return dict(
        patch_w=wgt((patch_dim, dim)), patch_b=jnp.zeros((1, dim), jnp.float32),
        pos_embedding=nrm((1, cfg["num_frames"], num_patches + 1, dim)),
        space_token=nrm((1, 1, dim)),
        temporal_token=nrm((1, 1, dim)),
        space_tr=transformer_params(),
        temporal_tr=transformer_params(),
        head_norm_g=jnp.ones((1, dim), jnp.float32),
        head_norm_b=jnp.zeros((1, dim), jnp.float32),
        head_w=wgt((dim, cfg["num_classes"])),
        head_b=jnp.zeros((1, cfg["num_classes"]), jnp.float32),
    )


# ----------------------------------------------------------------------------- #
if __name__ == "__main__":
    cfg = dict(
        image_size=16, patch_size=8, num_classes=10, num_frames=4,
        dim=32, depth=2, heads=2, dim_head=16, in_channels=3, scale_dim=4,
        pool="cls",
    )
    key = jax.random.PRNGKey(0)
    k_param, k_x = jax.random.split(key)
    params = init_params(k_param, cfg)

    b = 2
    x = jax.random.normal(
        k_x, (b, cfg["num_frames"], cfg["in_channels"], cfg["image_size"], cfg["image_size"]),
        dtype=jnp.float32,
    )

    logits = vivit_forward(x, params, cfg)
    logits = jax.block_until_ready(logits)
    assert logits.shape == (b, cfg["num_classes"])
    assert bool(jnp.all(jnp.isfinite(logits)))
    print("KERNEL_OK")
</pallas_src>

<mosaic_0001>
module attributes {stable_mosaic.version = 11 : i64} {
  func.func @_fused_linear_kernel(%arg0: i32, %arg1: i32, %arg2: memref<32x192xf32, #tpu.memory_space<vmem>>, %arg3: memref<192x32xbf16, #tpu.memory_space<vmem>>, %arg4: memref<1x32xf32, #tpu.memory_space<vmem>>, %arg5: memref<32x32xf32, #tpu.memory_space<vmem>>) attributes {dimension_semantics = [#tpu.dimension_semantics<parallel>, #tpu.dimension_semantics<parallel>], iteration_bounds = array<i64: 1, 1>, scalar_prefetch = 0 : i64, scratch_operands = 0 : i64, tpu.core_type = #tpu.core_type<tc>, window_params = [{transform_indices = @transform_0, window_bounds = array<i64: 32, 192>}, {transform_indices = @transform_1, window_bounds = array<i64: 192, 32>}, {transform_indices = @transform_2, window_bounds = array<i64: 1, 32>}, {transform_indices = @transform_3, window_bounds = array<i64: 32, 32>}]} {
    %c0 = arith.constant 0 : index
    %c0_0 = arith.constant 0 : index
    %0 = vector.load %arg2[%c0, %c0_0] : memref<32x192xf32, #tpu.memory_space<vmem>>, vector<32x192xf32>
    %1 = arith.truncf %0 : vector<32x192xf32> to vector<32x192xbf16>
    %c0_1 = arith.constant 0 : index
    %c0_2 = arith.constant 0 : index
    %2 = vector.load %arg3[%c0_1, %c0_2] : memref<192x32xbf16, #tpu.memory_space<vmem>>, vector<192x32xbf16>
    %cst = arith.constant dense<0.000000e+00> : vector<32x32xf32>
    %3 = tpu.matmul %1, %2, %cst {dimension_numbers = #tpu.dot_dimension_numbers<[1], [0], [0], [1], [0, 0, 1, 1], [], []>} : vector<32x192xbf16>, vector<192x32xbf16>, vector<32x32xf32> -> vector<32x32xf32>
    %c0_3 = arith.constant 0 : index
    %c0_4 = arith.constant 0 : index
    %4 = vector.load %arg4[%c0_3, %c0_4] : memref<1x32xf32, #tpu.memory_space<vmem>>, vector<1x32xf32>
    %5 = vector.broadcast %4 : vector<1x32xf32> to vector<32x32xf32>
    %6 = arith.addf %3, %5 : vector<32x32xf32>
    %c0_5 = arith.constant 0 : index
    %c0_6 = arith.constant 0 : index
    %7 = vector.load %arg5[%c0_5, %c0_6] : memref<32x32xf32, #tpu.memory_space<vmem>>, vector<32x32xf32>
    tpu.vector_store %arg5[%c0_5, %c0_6], %6 {strides = array<i32>} : memref<32x32xf32, #tpu.memory_space<vmem>>, vector<32x32xf32>,
    return
  }
  func.func @transform_0(%arg0: i32, %arg1: i32) -> (i32, i32) {
    %c0_i32 = arith.constant 0 : i32
    %c0_i32_0 = arith.constant 0 : i32
    return %arg0, %c0_i32 : i32, i32
  }
  func.func @transform_1(%arg0: i32, %arg1: i32) -> (i32, i32) {
    %c0_i32 = arith.constant 0 : i32
    %c0_i32_0 = arith.constant 0 : i32
    return %c0_i32, %arg1 : i32, i32
  }
  func.func @transform_2(%arg0: i32, %arg1: i32) -> (i32, i32) {
    %c0_i32 = arith.constant 0 : i32
    %c0_i32_0 = arith.constant 0 : i32
    return %c0_i32, %arg1 : i32, i32
  }
  func.func @transform_3(%arg0: i32, %arg1: i32) -> (i32, i32) {
    %c0_i32 = arith.constant 0 : i32
    return %arg0, %arg1 : i32, i32
  }
}

</mosaic_0001>

<llo_original>
// kernel: tpu_custom_call.1
$region0: #{tpu_custom_call.1}
  #allocation0 [shape = 'u32[]', space=smem, size = 0x4, offset = 0x4, fixed_abs, tag = 'smem constant byte address 0x4 - core index']
  #allocation1 [shape = 'u32[144,128]{1,0:T(1,128)}', space=vmem, size = 0x12000, scoped, tag = 'internal scratch']
  %s0 = inlined_call_operand.vmem [shape: f32[32,192], index: 0, kind: input, shape index: {}]
  %s1 = inlined_call_operand.vmem [shape: bf16[192,32], index: 1, kind: input, shape index: {}]
  %s2 = inlined_call_operand.vmem [shape: f32[1,32], index: 2, kind: input, shape index: {}]
  %s3 = inlined_call_operand.hbm [shape: f32[32,32], index: 3, kind: output, shape index: {}]
  %s4 = sld [smem:[#allocation0]]
  $region22: #{tpu_custom_call.1} parent=0
    _
  %s6 = ssub.s32 1, %s4
  %s7 = scalar_select 0, %s6, %s4
  $region1: #{tpu_custom_call.1} parent=0
    #allocation2 [shape = 'u8[16384]{0}', space=vmem, size = 0x4000, scoped, tag = 'output window, operand 0, single buffered']
    #allocation3 [shape = 's32[1]{0}', space=sflag, size = 0x4, scoped, tag = 'scoped memory for tpu_custom_call.1']
    %8 = vsyncpa [#allocation3], 0
    // Predicated region
    $region2: #{tpu_custom_call.1} parent=1 // pred_check
      _
    $region3: #{tpu_custom_call.1} parent=1 // pred_check_branch
      %10 = sbr.rel (0) target = $region5
    $region4: #{tpu_custom_call.1} parent=1 // pred_region
      _
    $region5: #{tpu_custom_call.1} parent=1 // pred_fallthru
      _
    // Predicated region
    $region6: #{tpu_custom_call.1} parent=1 // pred_check
      _
    $region7: #{tpu_custom_call.1} parent=1 // pred_check_branch
      %12 = sbr.rel (0) target = $region9
    $region8: #{tpu_custom_call.1} parent=1 // pred_region
      _
    $region9: #{tpu_custom_call.1} parent=1 // pred_fallthru
      _
    // Predicated region
    $region10: #{tpu_custom_call.1} parent=1 // pred_check
      _
    $region11: #{tpu_custom_call.1} parent=1 // pred_check_branch
      %14 = sbr.rel (0) target = $region13
    $region12: #{tpu_custom_call.1} parent=1 // pred_region
      _
    $region13: #{tpu_custom_call.1} parent=1 // pred_fallthru
      _
    %v16 = vld [vmem:[%s0] sm:$0xff]
    %v17 = vld [vmem:[%s0 + $0x8] sm:$0xff]
    %v18 = vld [vmem:[%s0 + $0x10] sm:$0xff]
    %v19 = vld [vmem:[%s0 + $0x18] sm:$0xff]
    %v20 = vld [vmem:[%s0 + $0x20] sm:$0xff]
    %v21 = vld [vmem:[%s0 + $0x28] sm:$0xff]
    %v22 = vld [vmem:[%s0 + $0x30] sm:$0xff]
    %v23 = vld [vmem:[%s0 + $0x38] sm:$0xff]
    %v24 = vpack.c.bf16 %v18, %v16
    %v25 = vpack.c.bf16 %v19, %v17
    %v26 = vpack.c.bf16 %v22, %v20
    %v27 = vpack.c.bf16 %v23, %v21
    %v28 = vld [vmem:[%s1] sm:$0xf]
    %v29 = vld [vmem:[%s1 + $0x4] sm:$0xf]
    %v30 = vld [vmem:[%s1 + $0x8] sm:$0xf]
    %v31 = vld [vmem:[%s1 + $0xc] sm:$0xf]
    %v32 = vld [vmem:[%s1 + $0x10] sm:$0xf]
    %v33 = vld [vmem:[%s1 + $0x14] sm:$0xf]
    %v34 = vld [vmem:[%s1 + $0x18] sm:$0xf]
    %v35 = vld [vmem:[%s1 + $0x1c] sm:$0xf]
    %v36 = vld [vmem:[%s1 + $0x20] sm:$0xf]
    %v37 = vld [vmem:[%s1 + $0x24] sm:$0xf]
    %v38 = vld [vmem:[%s1 + $0x28] sm:$0xf]
    %v39 = vld [vmem:[%s1 + $0x2c] sm:$0xf]
    %v40 = vld [vmem:[%s1 + $0x30] sm:$0xf]
    %v41 = vld [vmem:[%s1 + $0x34] sm:$0xf]
    %v42 = vld [vmem:[%s1 + $0x38] sm:$0xf]
    %v43 = vld [vmem:[%s1 + $0x3c] sm:$0xf]
    %v44 = vld [vmem:[%s1 + $0x40] sm:$0xf]
    %v45 = vld [vmem:[%s1 + $0x44] sm:$0xf]
    %v46 = vld [vmem:[%s1 + $0x48] sm:$0xf]
    %v47 = vld [vmem:[%s1 + $0x4c] sm:$0xf]
    %v48 = vld [vmem:[%s1 + $0x50] sm:$0xf]
    %v49 = vld [vmem:[%s1 + $0x54] sm:$0xf]
    %v50 = vld [vmem:[%s1 + $0x58] sm:$0xf]
    %v51 = vld [vmem:[%s1 + $0x5c] sm:$0xf]
    %v52 = vld [vmem:[%s2] sm:$0x1]
    %v54 = vlaneseq
    %v55 = vshrl.u32 %v54, 7
    %v56 = vsub.s32 0, %v55
    %v57 = vrot.slane %v52, %v56
    %v83 = vunpack.c.l.b16 %v28
    %v84 = vunpack.c.l.b16 %v29
    %v85 = vunpack.c.l.b16 %v30
    %v86 = vunpack.c.l.b16 %v31
    %v87 = vunpack.c.l.b16 %v32
    %v88 = vunpack.c.l.b16 %v33
    %v89 = vunpack.c.l.b16 %v34
    %v90 = vunpack.c.l.b16 %v35
    %v91 = vunpack.c.l.b16 %v36
    %v92 = vunpack.c.l.b16 %v37
    %v93 = vunpack.c.l.b16 %v38
    %v94 = vunpack.c.l.b16 %v39
    %v95 = vunpack.c.l.b16 %v40
    %v96 = vunpack.c.l.b16 %v41
    %v97 = vunpack.c.l.b16 %v42
    %v98 = vunpack.c.l.b16 %v43
    %v99 = vunpack.c.l.b16 %v44
    %v100 = vunpack.c.l.b16 %v45
    %v101 = vunpack.c.l.b16 %v46
    %v102 = vunpack.c.l.b16 %v47
    %v103 = vunpack.c.l.b16 %v48
    %v104 = vunpack.c.l.b16 %v49
    %v105 = vunpack.c.l.b16 %v50
    %v106 = vunpack.c.l.b16 %v51
    %v107 = vpack.c.b16 %v84, %v83
    %v108 = vpack.c.b16 %v86, %v85
    %v109 = vpack.c.b16 %v88, %v87
    %v110 = vpack.c.b16 %v90, %v89
    %v111 = vpack.c.b16 %v92, %v91
    %v112 = vpack.c.b16 %v94, %v93
    %v113 = vpack.c.b16 %v96, %v95
    %v114 = vpack.c.b16 %v98, %v97
    %v115 = vpack.c.b16 %v100, %v99
    %v116 = vpack.c.b16 %v102, %v101
    %v117 = vpack.c.b16 %v104, %v103
    %v118 = vpack.c.b16 %v106, %v105
    %vm131 = vcmask 523264
    %v133 = vsel %vm131, %v25, 0
    %v136 = vsel %vm131, %v27, 0
    %138 = vmatprep.subr.bf16.mxu0 0
    %139 = vmatpush1.bf16.msra.mxu0 %v107
    %140 = vmatprep.subr.bf16.mxu0 0
    %141 = vmatpush1.bf16.msra.mxu0 %v108
    %142 = vmatprep.subr.bf16.mxu0 0
    %143 = vmatpush1.bf16.msra.mxu0 %v109
    %144 = vmatprep.subr.bf16.mxu0 0
    %145 = vmatpush1.bf16.msra.mxu0 %v110
    %146 = vmatprep.subr.bf16.mxu0 0
    %147 = vmatpush1.bf16.msra.mxu0 %v111
    %148 = vmatprep.subr.bf16.mxu0 0
    %149 = vmatpush1.bf16.msra.mxu0 %v112
    %150 = vmatprep.subr.bf16.mxu0 0
    %151 = vmatpush1.bf16.msra.mxu0 %v113
    %152 = vmatprep.subr.bf16.mxu0 0
    %153 = vmatpush1.bf16.msra.mxu0 %v114
    %154 = vmatprep.subr.bf16.mxu0 0
    %155 = vmatpush1.bf16.msra.mxu0 %v115
    %156 = vmatprep.subr.bf16.mxu0 0
    %157 = vmatpush1.bf16.msra.mxu0 %v116
    %158 = vmatprep.subr.bf16.mxu0 0
    %159 = vmatpush1.bf16.msra.mxu0 %v117
    %160 = vmatprep.subr.bf16.mxu0 0
    %161 = vmatpush1.bf16.msra.mxu0 %v118
    %162 = vmatprep.subr.bf16.mxu0 0
    %163 = vmatpush1.bf16.msra.mxu0 0
    %164 = vmatprep.subr.bf16.mxu0 0
    %165 = vmatpush1.bf16.msra.mxu0 0
    %166 = vmatprep.subr.bf16.mxu0 0
    %167 = vmatpush1.bf16.msra.mxu0 0
    %168 = vmatprep.subr.bf16.mxu0 0
    %169 = vmatpush1.bf16.msra.mxu0 0
    %170 = vmatprep.mubr.bf16.mxu0 %v133
    %171 = vmatmul.mubr.bf16.gmra.mrb[0].mxu0 %v24
    %v172 = vpop.f32.mrb[0].mxu0
    %v173 = vadd.f32 %v57, %v172
    %v174 = vpop.f32.mrb[0].mxu0
    %v175 = vpop.f32.mrb[0].mxu0
    %v176 = vadd.f32 %v57, %v175
    %v177 = vpop.f32.mrb[0].mxu0
    %178 = vmatprep.mubr.bf16.mxu0 %v136
    %179 = vmatmul.mubr.bf16.gmra.mrb[0].mxu0 %v26
    %v180 = vpop.f32.mrb[0].mxu0
    %v181 = vadd.f32 %v57, %v180
    %v182 = vpop.f32.mrb[0].mxu0
    %v183 = vpop.f32.mrb[0].mxu0
    %v184 = vadd.f32 %v57, %v183
    %v185 = vpop.f32.mrb[0].mxu0
    %186 = vdwg.mxu0
    %vm187 = vcmask 261120
    %188 = vst.msk [vmem:[#allocation2] sm:$0xff] %vm187, %v173
    %189 = vst.msk [vmem:[#allocation2 + $0x8] sm:$0xff] %vm187, %v176
    %190 = vst.msk [vmem:[#allocation2 + $0x10] sm:$0xff] %vm187, %v181
    %191 = vst.msk [vmem:[#allocation2 + $0x18] sm:$0xff] %vm187, %v184
    // Predicated region
    $region14: #{tpu_custom_call.1} parent=1 // pred_check
      _
    $region15: #{tpu_custom_call.1} parent=1 // pred_check_branch
      %193 = sbr.rel (0) target = $region17
    $region16: #{tpu_custom_call.1} parent=1 // pred_region
      %s195 = ssub.s32 512, 512
      %196 = vsyncadd [#allocation3], %s195
      %s197 = sshll.u32 [#allocation2], 4
      %s198 = int_to_ptr.vmem [resolvable:$true] %s197
      %203 = dma.vmem_to_hbm [thread:$0]  %s198, 512, %s3, [#allocation3], 128, 128, 8
    $region17: #{tpu_custom_call.1} parent=1 // pred_fallthru
      _
    // Predicated region
    $region18: #{tpu_custom_call.1} parent=1 // pred_check
      _
    $region19: #{tpu_custom_call.1} parent=1 // pred_check_branch
      %205 = sbr.rel (0) target = $region21
    $region20: #{tpu_custom_call.1} parent=1 // pred_region
      %206 = dma.done [#allocation3], 512
    $region21: #{tpu_custom_call.1} parent=1 // pred_fallthru
      _
    %207 = vsyncpa [#allocation3], 1

</llo_original>
